<compile_context>
chip_gen: v7x
topology: tpu7x:2x2x1
jax: 0.10.0
libtpu: 0.0.40
codegen_flags: <defaults>
</compile_context>

<pallas_src>
import jax
import jax.numpy as jnp
from jax.experimental import pallas as pl
from jax.experimental.pallas import tpu as pltpu

LANE = 128


def _round_up(n, m):
    return (n + m - 1) // m * m


def _vmem_limit_bytes():
    """~3/4 of physical VMEM (~96 MiB on v5e/v6e, ~48 MiB on v7x), clamped."""
    try:
        cap = int(pltpu.get_tpu_info().vmem_capacity_bytes)
    except Exception:
        cap = 64 * 1024 * 1024                      # conservative (v7x physical)
    return int(min(max(cap * 3 // 4, 32 * 1024 * 1024), 112 * 1024 * 1024))


def slstm_kernel(x_ref, h_ref, wx_ref, wh_ref, b_ref, wo_ref, bo_ref, out_ref):
    """One row-tile of the sLSTM forward pass.

    x_ref:   (TILE_M, Ep)   lane-padded input rows, MXU dtype (bf16 default)
    h_ref:   (TILE_M, Ep)   lane-padded hidden-state rows, float32
    wx_ref:  (Ep, 4*Ep)     W, gate-blocked columns (VMEM resident)
    wh_ref:  (Ep, 4*Ep)     U, gate-blocked columns (VMEM resident)
    b_ref:   (1, 4*Ep)      bW + bU, f_bias folded into the f-gate block
    wo_ref:  (Ep, Ep)       output projection (resident)
    bo_ref:  (1, Ep)
    out_ref: (TILE_M, Ep)   float32 hidden_state tile
    """
    h = h_ref[...]                                   # full-f32 gating operand
    ep = h.shape[-1]

    # Gate pre-activations: two accumulating MXU matmuls, f32 accumulation.
    z = jnp.dot(x_ref[...], wx_ref[...], preferred_element_type=jnp.float32)
    z = z + jnp.dot(h.astype(wh_ref.dtype), wh_ref[...],
                    preferred_element_type=jnp.float32)
    z = z + b_ref[...]

    i = z[:, 0 * ep:1 * ep]
    f = z[:, 1 * ep:2 * ep]                          # f_bias already folded in
    c = z[:, 2 * ep:3 * ep]
    o = z[:, 3 * ep:4 * ep]

    # Exact rewrite of the stabilized exp/exp/normalizer of the reference:
    #   (e^{f-s} h + e^{i-s} tanh c) / (e^{f-s} + e^{i-s})
    #     == h + sigmoid(i - f) * (tanh c - h)
    g = jax.nn.sigmoid(i - f)
    cell = h + g * (jnp.tanh(c) - h)
    hs = jax.nn.sigmoid(o) * jnp.tanh(cell)
    # TODO(synk): for very large (tile_m, Ep) on v7x, chunk this elementwise
    # region over sublane-aligned row sub-blocks to bound live f32 VMEM.

    out = jnp.dot(hs.astype(wo_ref.dtype), wo_ref[...],
                  preferred_element_type=jnp.float32)
    out_ref[...] = (out + bo_ref[...]).astype(out_ref.dtype)


def fuse_params(params, n_embd, *, mxu_dtype=jnp.bfloat16):
    """Lane-pad and gate-block the weights; pre-add biases.

    Layout (Ep = n_embd rounded up to 128; all padding zero):
      Wx, Wh (Ep, 4*Ep): gate g occupies columns [g*Ep, g*Ep + E).
      b  (1, 4*Ep):      bW + bU with f_bias folded into the f-gate block
                         (exact: f_bias only shifts f_pre inside the sigmoid).
      Wo (Ep, Ep), bo (1, Ep): zero-padded output projection.
    Weights default to bfloat16 (MXU-native on v5e/v6e/v7x); biases and all
    gating math stay float32.
    """
    E = n_embd
    ep = _round_up(E, LANE)

    b = (params["bW"] + params["bU"]).reshape(4, E)
    b = b.at[1].add(params["f_bias"].reshape(E))                 # fold f_bias
    b = jnp.zeros((4, ep), jnp.float32).at[:, :E].set(b).reshape(1, 4 * ep)

    def gate_block(w):                                # (E, 4E) -> (Ep, 4*Ep)
        out = jnp.zeros((ep, 4 * ep), jnp.float32)
        for g in range(4):
            out = out.at[:E, g * ep:g * ep + E].set(w[:, g * E:(g + 1) * E])
        return out.astype(mxu_dtype)

    wo = jnp.zeros((ep, ep), jnp.float32).at[:E, :E].set(params["Wo"])
    bo = jnp.zeros((1, ep), jnp.float32).at[:, :E].set(params["bo"])

    return dict(Wx=gate_block(params["W"]), Wh=gate_block(params["U"]), b=b,
                Wo=wo.astype(mxu_dtype), bo=bo, E=E, Ep=ep)


def slstm_forward(x, hidden_states, fused, *, tile_m=512):
    """Pallas sLSTM forward.  Returns (x, hidden_state) like the torch module."""
    B, S, E = x.shape
    assert E == fused["E"]
    ep = fused["Ep"]
    wdt = fused["Wx"].dtype                 # MXU operand dtype (bf16 default)

    M = B * S
    # Big, 16-row-aligned tiles toward the VMEM ceiling, but keep >= 2 grid
    # steps when there is enough work so both v7x TensorCores stay busy.
    tile_m = min(tile_m, _round_up(M, 8))
    tile_m = _round_up(tile_m, 16 if tile_m >= 16 else 8)
    while tile_m >= 16 and pl.cdiv(M, tile_m) < 2:
        tile_m //= 2
    tile_m = _round_up(tile_m, 8)
    Mp = _round_up(M, tile_m)

    def pad(a, dtype):
        a = a.reshape(M, E).astype(dtype)
        if Mp == M and ep == E:
            return a                               # no host-side copy at all
        return jnp.zeros((Mp, ep), dtype).at[:M, :E].set(a)

    x_in = pad(x, wdt)                             # matmul-only operand
    h_in = pad(hidden_states, jnp.float32)         # stays f32 for gating

    itemsize = jnp.dtype(wdt).itemsize
    weight_bytes = (2 * ep * 4 * ep + ep * ep) * itemsize + (4 * ep + ep) * 4
    cost = pl.CostEstimate(
        flops=2 * Mp * (2 * ep * 4 * ep + ep * ep),
        transcendentals=4 * Mp * ep,   # sigmoid(i-f), tanh(c), tanh(cell), sigmoid(o)
        bytes_accessed=Mp * ep * (itemsize + 4 + 4) + weight_bytes,
    )

    out = pl.pallas_call(
        slstm_kernel,
        out_shape=jax.ShapeDtypeStruct((Mp, ep), jnp.float32),
        grid=(Mp // tile_m,),
        in_specs=[
            pl.BlockSpec((tile_m, ep), lambda i: (i, 0)),        # x rows (streamed)
            pl.BlockSpec((tile_m, ep), lambda i: (i, 0)),        # h rows (streamed)
            # Constant-index blocks stay VMEM resident across grid steps.
            # TODO(synk): single-buffer these (pipeline_mode=pl.Buffered(1))
            # and add a gate/K-tiled reduction grid once Ep reaches ~1024 so
            # resident weights still fit v7x's 64 MiB VMEM.
            pl.BlockSpec((ep, 4 * ep), lambda i: (0, 0)),         # Wx
            pl.BlockSpec((ep, 4 * ep), lambda i: (0, 0)),         # Wh
            pl.BlockSpec((1, 4 * ep), lambda i: (0, 0)),          # b
            pl.BlockSpec((ep, ep), lambda i: (0, 0)),             # Wo
            pl.BlockSpec((1, ep), lambda i: (0, 0)),              # bo
        ],
        out_specs=pl.BlockSpec((tile_m, ep), lambda i: (i, 0)),
        compiler_params=pltpu.CompilerParams(
            dimension_semantics=("parallel",),       # row tiles are independent
            vmem_limit_bytes=_vmem_limit_bytes(),
        ),
        cost_estimate=cost,
    )(x_in, h_in, fused["Wx"], fused["Wh"], fused["b"], fused["Wo"], fused["bo"])

    # Full-extent slice + contiguous reshape: free when no padding was added.
    hidden_state = out[:M, :E].reshape(B, S, E)
    # TODO(synk): training-mode dropout (random mask) not implemented; the
    # module's nn.Dropout is identity at inference time.
    return x, hidden_state


def init_params(key, n_embd):
    """Deterministic init mimicking nn.Linear's uniform(-1/sqrt(fan_in), ...).

    Weights are stored pre-transposed as (in_features, out_features) so that
    y = x @ W + b matches torch.nn.Linear semantics.
    """
    ks = jax.random.split(key, 6)
    bound = 1.0 / float(jnp.sqrt(n_embd))
    u = lambda k, shape: jax.random.uniform(k, shape, jnp.float32, -bound, bound)
    return dict(
        W=u(ks[0], (n_embd, 4 * n_embd)),
        bW=u(ks[1], (1, 4 * n_embd)),
        U=u(ks[2], (n_embd, 4 * n_embd)),
        bU=u(ks[3], (1, 4 * n_embd)),
        Wo=u(ks[4], (n_embd, n_embd)),
        bo=u(ks[5], (1, n_embd)),
        f_bias=jnp.full((1, n_embd), 3.0, jnp.float32),
    )


def ref_forward(x, h, p):
    """Pure-JAX reference matching the PyTorch forward (eval mode, global stab)."""
    E = x.shape[-1]
    z = x @ p["W"] + p["bW"] + h @ p["U"] + p["bU"]
    i, f, c, o = (z[..., :E], z[..., E:2 * E], z[..., 2 * E:3 * E], z[..., 3 * E:])
    stab = jnp.maximum(jnp.max(i), jnp.max(f))
    i = jnp.exp(i - stab)
    f = jnp.exp(f + p["f_bias"] - stab)
    cell = (f * h + i * jnp.tanh(c)) / (f + i)
    hs = jax.nn.sigmoid(o) * jnp.tanh(cell)
    return x, hs @ p["Wo"] + p["bo"]


if __name__ == "__main__":
    B, S, E = 2, 8, 32   # batch, seq_len, n_embd

    key = jax.random.PRNGKey(0)
    kx, kh, kp = jax.random.split(key, 3)
    x = jax.random.normal(kx, (B, S, E), jnp.float32)
    hidden = jax.random.normal(kh, (B, S, E), jnp.float32)
    params = init_params(kp, E)

    _, h_ref = ref_forward(x, hidden, params)

    # Default path: bf16 MXU operands, f32 accumulation + f32 gating.
    fused = fuse_params(params, E)
    x_out, h_out = slstm_forward(x, hidden, fused)    # tile_m resolves to 8 -> grid=(2,)
    jax.block_until_ready(h_out)
    assert x_out.shape == x.shape and bool(jnp.array_equal(x_out, x))
    err_bf16 = float(jnp.max(jnp.abs(h_out - h_ref)))
    assert err_bf16 < 5e-2, f"bf16 path mismatch: {err_bf16}"

    # Full-f32 MXU path (exact single-sigmoid reformulation; residual diff is
    # only MXU/XLA matmul precision).
    fused_f32 = fuse_params(params, E, mxu_dtype=jnp.float32)
    _, h_f32 = slstm_forward(x, hidden, fused_f32)
    jax.block_until_ready(h_f32)
    err_f32 = float(jnp.max(jnp.abs(h_f32 - h_ref)))
    assert err_f32 < 1e-2, f"f32 path mismatch: {err_f32}"

    print("KERNEL_OK")
</pallas_src>

<mosaic_0001>
module attributes {stable_mosaic.version = 11 : i64} {
  func.func @slstm_kernel(%arg0: i32, %arg1: memref<8x128xbf16, #tpu.memory_space<vmem>>, %arg2: memref<8x128xf32, #tpu.memory_space<vmem>>, %arg3: memref<128x512xbf16, #tpu.memory_space<vmem>>, %arg4: memref<128x512xbf16, #tpu.memory_space<vmem>>, %arg5: memref<1x512xf32, #tpu.memory_space<vmem>>, %arg6: memref<128x128xbf16, #tpu.memory_space<vmem>>, %arg7: memref<1x128xf32, #tpu.memory_space<vmem>>, %arg8: memref<8x128xf32, #tpu.memory_space<vmem>>) attributes {dimension_semantics = [#tpu.dimension_semantics<parallel>], iteration_bounds = array<i64: 2>, scalar_prefetch = 0 : i64, scratch_operands = 0 : i64, tpu.core_type = #tpu.core_type<tc>, window_params = [{transform_indices = @transform_0, window_bounds = array<i64: 8, 128>}, {transform_indices = @transform_1, window_bounds = array<i64: 8, 128>}, {pipeline_mode = #tpu.pipeline_mode<synchronous>, transform_indices = @transform_2, window_bounds = array<i64: 128, 512>}, {pipeline_mode = #tpu.pipeline_mode<synchronous>, transform_indices = @transform_3, window_bounds = array<i64: 128, 512>}, {pipeline_mode = #tpu.pipeline_mode<synchronous>, transform_indices = @transform_4, window_bounds = array<i64: 1, 512>}, {pipeline_mode = #tpu.pipeline_mode<synchronous>, transform_indices = @transform_5, window_bounds = array<i64: 128, 128>}, {pipeline_mode = #tpu.pipeline_mode<synchronous>, transform_indices = @transform_6, window_bounds = array<i64: 1, 128>}, {transform_indices = @transform_7, window_bounds = array<i64: 8, 128>}]} {
    %c0 = arith.constant 0 : index
    %c0_0 = arith.constant 0 : index
    %0 = vector.load %arg2[%c0, %c0_0] : memref<8x128xf32, #tpu.memory_space<vmem>>, vector<8x128xf32>
    %c0_1 = arith.constant 0 : index
    %c0_2 = arith.constant 0 : index
    %1 = vector.load %arg1[%c0_1, %c0_2] : memref<8x128xbf16, #tpu.memory_space<vmem>>, vector<8x128xbf16>
    %c0_3 = arith.constant 0 : index
    %c0_4 = arith.constant 0 : index
    %2 = vector.load %arg3[%c0_3, %c0_4] : memref<128x512xbf16, #tpu.memory_space<vmem>>, vector<128x512xbf16>
    %cst = arith.constant dense<0.000000e+00> : vector<8x512xf32>
    %3 = tpu.matmul %1, %2, %cst {dimension_numbers = #tpu.dot_dimension_numbers<[1], [0], [0], [1], [0, 0, 1, 1], [], []>} : vector<8x128xbf16>, vector<128x512xbf16>, vector<8x512xf32> -> vector<8x512xf32>
    %4 = arith.truncf %0 : vector<8x128xf32> to vector<8x128xbf16>
    %c0_5 = arith.constant 0 : index
    %c0_6 = arith.constant 0 : index
    %5 = vector.load %arg4[%c0_5, %c0_6] : memref<128x512xbf16, #tpu.memory_space<vmem>>, vector<128x512xbf16>
    %cst_7 = arith.constant dense<0.000000e+00> : vector<8x512xf32>
    %6 = tpu.matmul %4, %5, %cst_7 {dimension_numbers = #tpu.dot_dimension_numbers<[1], [0], [0], [1], [0, 0, 1, 1], [], []>} : vector<8x128xbf16>, vector<128x512xbf16>, vector<8x512xf32> -> vector<8x512xf32>
    %7 = arith.addf %3, %6 : vector<8x512xf32>
    %c0_8 = arith.constant 0 : index
    %c0_9 = arith.constant 0 : index
    %8 = vector.load %arg5[%c0_8, %c0_9] : memref<1x512xf32, #tpu.memory_space<vmem>>, vector<1x512xf32>
    %9 = vector.broadcast %8 : vector<1x512xf32> to vector<8x512xf32>
    %10 = arith.addf %7, %9 : vector<8x512xf32>
    %11 = vector.extract_strided_slice %10 {offsets = [0, 0], sizes = [8, 128], strides = [1, 1]} : vector<8x512xf32> to vector<8x128xf32>
    %12 = vector.extract_strided_slice %10 {offsets = [0, 128], sizes = [8, 128], strides = [1, 1]} : vector<8x512xf32> to vector<8x128xf32>
    %13 = vector.extract_strided_slice %10 {offsets = [0, 256], sizes = [8, 128], strides = [1, 1]} : vector<8x512xf32> to vector<8x128xf32>
    %14 = vector.extract_strided_slice %10 {offsets = [0, 384], sizes = [8, 128], strides = [1, 1]} : vector<8x512xf32> to vector<8x128xf32>
    %15 = arith.subf %11, %12 : vector<8x128xf32>
    %16 = arith.negf %15 : vector<8x128xf32>
    %17 = math.exp %16 : vector<8x128xf32>
    %cst_10 = arith.constant 1.000000e+00 : f32
    %18 = vector.broadcast %cst_10 : f32 to vector<8x128xf32>
    %19 = arith.addf %18, %17 : vector<8x128xf32>
    %20 = arith.divf %18, %19 : vector<8x128xf32>
    %21 = math.tanh %13 : vector<8x128xf32>
    %22 = arith.subf %21, %0 : vector<8x128xf32>
    %23 = arith.mulf %20, %22 : vector<8x128xf32>
    %24 = arith.addf %0, %23 : vector<8x128xf32>
    %25 = arith.negf %14 : vector<8x128xf32>
    %26 = math.exp %25 : vector<8x128xf32>
    %cst_11 = arith.constant 1.000000e+00 : f32
    %27 = vector.broadcast %cst_11 : f32 to vector<8x128xf32>
    %28 = arith.addf %27, %26 : vector<8x128xf32>
    %29 = arith.divf %27, %28 : vector<8x128xf32>
    %30 = math.tanh %24 : vector<8x128xf32>
    %31 = arith.mulf %29, %30 : vector<8x128xf32>
    %32 = arith.truncf %31 : vector<8x128xf32> to vector<8x128xbf16>
    %c0_12 = arith.constant 0 : index
    %c0_13 = arith.constant 0 : index
    %33 = vector.load %arg6[%c0_12, %c0_13] : memref<128x128xbf16, #tpu.memory_space<vmem>>, vector<128x128xbf16>
    %cst_14 = arith.constant dense<0.000000e+00> : vector<8x128xf32>
    %34 = tpu.matmul %32, %33, %cst_14 {dimension_numbers = #tpu.dot_dimension_numbers<[1], [0], [0], [1], [0, 0, 1, 1], [], []>} : vector<8x128xbf16>, vector<128x128xbf16>, vector<8x128xf32> -> vector<8x128xf32>
    %c0_15 = arith.constant 0 : index
    %c0_16 = arith.constant 0 : index
    %35 = vector.load %arg7[%c0_15, %c0_16] : memref<1x128xf32, #tpu.memory_space<vmem>>, vector<1x128xf32>
    %36 = vector.broadcast %35 : vector<1x128xf32> to vector<8x128xf32>
    %37 = arith.addf %34, %36 : vector<8x128xf32>
    %c0_17 = arith.constant 0 : index
    %c0_18 = arith.constant 0 : index
    %38 = vector.load %arg8[%c0_17, %c0_18] : memref<8x128xf32, #tpu.memory_space<vmem>>, vector<8x128xf32>
    tpu.vector_store %arg8[%c0_17, %c0_18], %37 {strides = array<i32>} : memref<8x128xf32, #tpu.memory_space<vmem>>, vector<8x128xf32>,
    return
  }
  func.func @transform_0(%arg0: i32) -> (i32, i32) {
    %c0_i32 = arith.constant 0 : i32
    %c0_i32_0 = arith.constant 0 : i32
    return %arg0, %c0_i32 : i32, i32
  }
  func.func @transform_1(%arg0: i32) -> (i32, i32) {
    %c0_i32 = arith.constant 0 : i32
    %c0_i32_0 = arith.constant 0 : i32
    return %arg0, %c0_i32 : i32, i32
  }
  func.func @transform_2(%arg0: i32) -> (i32, i32) {
    %c0_i32 = arith.constant 0 : i32
    %c0_i32_0 = arith.constant 0 : i32
    %c0_i32_1 = arith.constant 0 : i32
    return %c0_i32, %c0_i32_0 : i32, i32
  }
  func.func @transform_3(%arg0: i32) -> (i32, i32) {
    %c0_i32 = arith.constant 0 : i32
    %c0_i32_0 = arith.constant 0 : i32
    %c0_i32_1 = arith.constant 0 : i32
    return %c0_i32, %c0_i32_0 : i32, i32
  }
  func.func @transform_4(%arg0: i32) -> (i32, i32) {
    %c0_i32 = arith.constant 0 : i32
    %c0_i32_0 = arith.constant 0 : i32
    %c0_i32_1 = arith.constant 0 : i32
    return %c0_i32, %c0_i32_0 : i32, i32
  }
  func.func @transform_5(%arg0: i32) -> (i32, i32) {
    %c0_i32 = arith.constant 0 : i32
    %c0_i32_0 = arith.constant 0 : i32
    %c0_i32_1 = arith.constant 0 : i32
    return %c0_i32, %c0_i32_0 : i32, i32
  }
  func.func @transform_6(%arg0: i32) -> (i32, i32) {
    %c0_i32 = arith.constant 0 : i32
    %c0_i32_0 = arith.constant 0 : i32
    %c0_i32_1 = arith.constant 0 : i32
    return %c0_i32, %c0_i32_0 : i32, i32
  }
  func.func @transform_7(%arg0: i32) -> (i32, i32) {
    %c0_i32 = arith.constant 0 : i32
    %c0_i32_0 = arith.constant 0 : i32
    return %arg0, %c0_i32 : i32, i32
  }
}

</mosaic_0001>

<llo_original>
// kernel: tpu_custom_call.1
$region0: #{tpu_custom_call.1}
  #allocation0 [shape = 'u32[]', space=smem, size = 0x4, offset = 0x4, fixed_abs, tag = 'smem constant byte address 0x4 - core index']
  #allocation1 [shape = 'u32[144,128]{1,0:T(1,128)}', space=vmem, size = 0x12000, scoped, tag = 'internal scratch']
  %s0 = inlined_call_operand.hbm [shape: bf16[16,128], index: 0, kind: input, shape index: {}]
  %s1 = inlined_call_operand.hbm [shape: f32[16,128], index: 1, kind: input, shape index: {}]
  %s2 = inlined_call_operand.hbm [shape: bf16[128,512], index: 2, kind: input, shape index: {}]
  %s3 = inlined_call_operand.hbm [shape: bf16[128,512], index: 3, kind: input, shape index: {}]
  %s4 = inlined_call_operand.vmem [shape: f32[1,512], index: 4, kind: input, shape index: {}]
  %s5 = inlined_call_operand.hbm [shape: bf16[128,128], index: 5, kind: input, shape index: {}]
  %s6 = inlined_call_operand.vmem [shape: f32[1,128], index: 6, kind: input, shape index: {}]
  %s7 = inlined_call_operand.hbm [shape: f32[16,128], index: 7, kind: output, shape index: {}]
  %s8 = sld [smem:[#allocation0]]
  $region81: #{tpu_custom_call.1} parent=0
    _
  %s10 = ssub.s32 1, %s8
  %s11 = scalar_select 0, %s10, %s8
  $region1: #{tpu_custom_call.1} parent=0
    #allocation2 [shape = 'u8[4096]{0}', space=vmem, size = 0x1000, scoped, tag = 'input window, operand 0']
    #allocation3 [shape = 's32[2]{0}', space=sflag, size = 0x8, scoped, tag = 'scoped memory for tpu_custom_call.1']
    #allocation4 [shape = 's32[2]{0}', space=sflag, size = 0x8, scoped, tag = 'scoped memory for tpu_custom_call.1']
    #allocation5 [shape = 'u8[8192]{0}', space=vmem, size = 0x2000, scoped, tag = 'input window, operand 1']
    #allocation6 [shape = 's32[2]{0}', space=sflag, size = 0x8, scoped, tag = 'scoped memory for tpu_custom_call.1']
    #allocation7 [shape = 'u8[131072]{0}', space=vmem, size = 0x20000, scoped, tag = 'input window, operand 2, single buffered']
    #allocation8 [shape = 'u8[131072]{0}', space=vmem, size = 0x20000, scoped, tag = 'input window, operand 3, single buffered']
    #allocation9 [shape = 's32[1]{0}', space=sflag, size = 0x4, scoped, tag = 'scoped memory for tpu_custom_call.1']
    #allocation10 [shape = 'u8[32768]{0}', space=vmem, size = 0x8000, scoped, tag = 'input window, operand 5, single buffered']
    #allocation11 [shape = 'u8[8192]{0}', space=vmem, size = 0x2000, scoped, tag = 'output window, operand 0']
    %12 = vsyncpa [#allocation3], 0
    %s13 = scalar_lea.sflag [#allocation3], 1
    %14 = vsyncpa %s13, 0
    %15 = vsyncpa [#allocation6], 0
    %s16 = scalar_lea.sflag [#allocation6], 1
    %17 = vsyncpa %s16, 0
    %18 = vsyncpa [#allocation9], 0
    %19 = vsyncpa [#allocation4], 0
    %s20 = scalar_lea.sflag [#allocation4], 1
    %21 = vsyncpa %s20, 0
    loop: start=0, step=1, limit=4
    $region2: #{tpu_custom_call.1} parent=1 // loop_pre_header
      _
    $region3: #{tpu_custom_call.1} parent=1 // loop_header
      %s23 = sphi 0, %s27
      %p24 = scmp.ge.s32.totalorder %s23, 4
      %s33 = sphi 0, %s35
      %s36 = sphi 0, %s33
      %s37 = sphi 0, %s36
      %s53 = sphi 0, %s37
      %s59 = sphi 0, %s61
      %s62 = sphi 0, %s59
      %s63 = sphi 0, %s62
      %s79 = sphi 0, %s63
      %s83 = sphi 0, %s83
      %s85 = sphi 0, %s83
      %s86 = sphi 0, %s85
      %s100 = sphi 0, %s86
      %s104 = sphi 0, %s104
      %s106 = sphi 0, %s104
      %s107 = sphi 0, %s106
      %s121 = sphi 0, %s107
      %s125 = sphi 0, %s125
      %s127 = sphi 0, %s125
      %s128 = sphi 0, %s127
      %s142 = sphi 0, %s128
      %s146 = sphi 0, %s146
      %s148 = sphi 0, %s146
      %s149 = sphi 0, %s148
      %s163 = sphi 0, %s149
      %s167 = sphi 0, %s167
      %s169 = sphi 0, %s167
      %s170 = sphi 0, %s169
      %s184 = sphi 0, %s170
      %s190 = sphi 0, %s192
      %s193 = sphi 0, %s190
      %s194 = sphi 0, %s193
      %s210 = sphi 0, %s194
    $region4: #{tpu_custom_call.1} parent=1 // loop_header_branch
      %26 = sbr.rel (%p24) target = $region8
    $region5: #{tpu_custom_call.1} parent=1 // loop_body
      %s28 = ssub.s32 %s23, 1
      %s29 = ssub.s32 %s23, 2
      %s30 = sadd.s32 %s23, 1
      %s31 = ssub.s32 %s23, %s30
      %p32 = scmp.eq.s32.totalorder %s31, 0
      %s34 = sadd.s32 %s33, 1
      %s35 = scalar_select %p32, %s33, %s34
      %p38 = pneg %p32
      %p39 = scmp.eq.s32.totalorder %s23, 1
      %p40 = por %p38, %p39
      %p41 = scmp.ne.s32.totalorder %s33, %s36
      %p42 = scmp.eq.s32.totalorder %s23, 0
      %p43 = por %p41, %p42
      %p44 = scmp.ne.s32.totalorder %s33, %s36
      %p45 = scmp.eq.s32.totalorder %s28, 1
      %p46 = por %p44, %p45
      %p47 = scmp.ne.s32.totalorder %s36, %s37
      %p48 = scmp.eq.s32.totalorder %s28, 0
      %p49 = por %p47, %p48
      %p50 = scmp.ne.s32.totalorder %s36, %s37
      %p51 = scmp.eq.s32.totalorder %s29, 1
      %p52 = por %p50, %p51
      %p54 = scmp.ne.s32.totalorder %s37, %s53
      %p55 = scmp.eq.s32.totalorder %s29, 0
      %p56 = por %p54, %p55
      %s57 = ssub.s32 %s23, %s30
      %p58 = scmp.eq.s32.totalorder %s57, 0
      %s60 = sadd.s32 %s59, 1
      %s61 = scalar_select %p58, %s59, %s60
      %p64 = pneg %p58
      %p65 = scmp.eq.s32.totalorder %s23, 1
      %p66 = por %p64, %p65
      %p67 = scmp.ne.s32.totalorder %s59, %s62
      %p68 = scmp.eq.s32.totalorder %s23, 0
      %p69 = por %p67, %p68
      %p70 = scmp.ne.s32.totalorder %s59, %s62
      %p71 = scmp.eq.s32.totalorder %s28, 1
      %p72 = por %p70, %p71
      %p73 = scmp.ne.s32.totalorder %s62, %s63
      %p74 = scmp.eq.s32.totalorder %s28, 0
      %p75 = por %p73, %p74
      %p76 = scmp.ne.s32.totalorder %s62, %s63
      %p77 = scmp.eq.s32.totalorder %s29, 1
      %p78 = por %p76, %p77
      %p80 = scmp.ne.s32.totalorder %s63, %s79
      %p81 = scmp.eq.s32.totalorder %s29, 0
      %p82 = por %p80, %p81
      %s84 = sadd.s32 %s83, 1
      %p87 = scmp.eq.s32.totalorder %s23, 1
      %p88 = scmp.ne.s32.totalorder %s83, %s85
      %p89 = scmp.eq.s32.totalorder %s23, 0
      %p90 = por %p88, %p89
      %p91 = scmp.ne.s32.totalorder %s83, %s85
      %p92 = scmp.eq.s32.totalorder %s28, 1
      %p93 = por %p91, %p92
      %p94 = scmp.ne.s32.totalorder %s85, %s86
      %p95 = scmp.eq.s32.totalorder %s28, 0
      %p96 = por %p94, %p95
      %p97 = scmp.ne.s32.totalorder %s85, %s86
      %p98 = scmp.eq.s32.totalorder %s29, 1
      %p99 = por %p97, %p98
      %p101 = scmp.ne.s32.totalorder %s86, %s100
      %p102 = scmp.eq.s32.totalorder %s29, 0
      %p103 = por %p101, %p102
      %s105 = sadd.s32 %s104, 1
      %p108 = scmp.eq.s32.totalorder %s23, 1
      %p109 = scmp.ne.s32.totalorder %s104, %s106
      %p110 = scmp.eq.s32.totalorder %s23, 0
      %p111 = por %p109, %p110
      %p112 = scmp.ne.s32.totalorder %s104, %s106
      %p113 = scmp.eq.s32.totalorder %s28, 1
      %p114 = por %p112, %p113
      %p115 = scmp.ne.s32.totalorder %s106, %s107
      %p116 = scmp.eq.s32.totalorder %s28, 0
      %p117 = por %p115, %p116
      %p118 = scmp.ne.s32.totalorder %s106, %s107
      %p119 = scmp.eq.s32.totalorder %s29, 1
      %p120 = por %p118, %p119
      %p122 = scmp.ne.s32.totalorder %s107, %s121
      %p123 = scmp.eq.s32.totalorder %s29, 0
      %p124 = por %p122, %p123
      %s126 = sadd.s32 %s125, 1
      %p129 = scmp.eq.s32.totalorder %s23, 1
      %p130 = scmp.ne.s32.totalorder %s125, %s127
      %p131 = scmp.eq.s32.totalorder %s23, 0
      %p132 = por %p130, %p131
      %p133 = scmp.ne.s32.totalorder %s125, %s127
      %p134 = scmp.eq.s32.totalorder %s28, 1
      %p135 = por %p133, %p134
      %p136 = scmp.ne.s32.totalorder %s127, %s128
      %p137 = scmp.eq.s32.totalorder %s28, 0
      %p138 = por %p136, %p137
      %p139 = scmp.ne.s32.totalorder %s127, %s128
      %p140 = scmp.eq.s32.totalorder %s29, 1
      %p141 = por %p139, %p140
      %p143 = scmp.ne.s32.totalorder %s128, %s142
      %p144 = scmp.eq.s32.totalorder %s29, 0
      %p145 = por %p143, %p144
      %s147 = sadd.s32 %s146, 1
      %p150 = scmp.eq.s32.totalorder %s23, 1
      %p151 = scmp.ne.s32.totalorder %s146, %s148
      %p152 = scmp.eq.s32.totalorder %s23, 0
      %p153 = por %p151, %p152
      %p154 = scmp.ne.s32.totalorder %s146, %s148
      %p155 = scmp.eq.s32.totalorder %s28, 1
      %p156 = por %p154, %p155
      %p157 = scmp.ne.s32.totalorder %s148, %s149
      %p158 = scmp.eq.s32.totalorder %s28, 0
      %p159 = por %p157, %p158
      %p160 = scmp.ne.s32.totalorder %s148, %s149
      %p161 = scmp.eq.s32.totalorder %s29, 1
      %p162 = por %p160, %p161
      %p164 = scmp.ne.s32.totalorder %s149, %s163
      %p165 = scmp.eq.s32.totalorder %s29, 0
      %p166 = por %p164, %p165
      %s168 = sadd.s32 %s167, 1
      %p171 = scmp.eq.s32.totalorder %s23, 1
      %p172 = scmp.ne.s32.totalorder %s167, %s169
      %p173 = scmp.eq.s32.totalorder %s23, 0
      %p174 = por %p172, %p173
      %p175 = scmp.ne.s32.totalorder %s167, %s169
      %p176 = scmp.eq.s32.totalorder %s28, 1
      %p177 = por %p175, %p176
      %p178 = scmp.ne.s32.totalorder %s169, %s170
      %p179 = scmp.eq.s32.totalorder %s28, 0
      %p180 = por %p178, %p179
      %p181 = scmp.ne.s32.totalorder %s169, %s170
      %p182 = scmp.eq.s32.totalorder %s29, 1
      %p183 = por %p181, %p182
      %p185 = scmp.ne.s32.totalorder %s170, %s184
      %p186 = scmp.eq.s32.totalorder %s29, 0
      %p187 = por %p185, %p186
      %s188 = ssub.s32 %s23, %s30
      %p189 = scmp.eq.s32.totalorder %s188, 0
      %s191 = sadd.s32 %s190, 1
      %s192 = scalar_select %p189, %s190, %s191
      %p195 = pneg %p189
      %p196 = scmp.eq.s32.totalorder %s23, 1
      %p197 = por %p195, %p196
      %p198 = scmp.ne.s32.totalorder %s190, %s193
      %p199 = scmp.eq.s32.totalorder %s23, 0
      %p200 = por %p198, %p199
      %p201 = scmp.ne.s32.totalorder %s190, %s193
      %p202 = scmp.eq.s32.totalorder %s28, 1
      %p203 = por %p201, %p202
      %p204 = scmp.ne.s32.totalorder %s193, %s194
      %p205 = scmp.eq.s32.totalorder %s28, 0
      %p206 = por %p204, %p205
      %p207 = scmp.ne.s32.totalorder %s193, %s194
      %p208 = scmp.eq.s32.totalorder %s29, 1
      %p209 = por %p207, %p208
      %p211 = scmp.ne.s32.totalorder %s194, %s210
      %p212 = scmp.eq.s32.totalorder %s29, 0
      %p213 = por %p211, %p212
      %p214 = scmp.le.s32.totalorder 1, %s23
      %p215 = scmp.lt.s32.totalorder %s23, 3
      %p216 = pnand %p214, %p215
      %p217 = pneg %p216
      // Predicated region
      $region9: #{tpu_custom_call.1} parent=5 // pred_check
        _
      $region10: #{tpu_custom_call.1} parent=5 // pred_check_branch
        %219 = sbr.rel (%p216) target = $region12
      $region11: #{tpu_custom_call.1} parent=5 // pred_region
        %s220 = ssub.s32 %s23, 1
        // Predicated region
        $region13: #{tpu_custom_call.1} parent=11 // pred_check
          %p221 = pneg %p96
        $region14: #{tpu_custom_call.1} parent=11 // pred_check_branch
          %223 = sbr.rel (%p221) target = $region16
        $region15: #{tpu_custom_call.1} parent=11 // pred_region
          %s225 = ssub.s32 4096, 4096
          %226 = vsyncadd [#allocation6], %s225
          %s227 = sshll.u32 [#allocation7], 4
          %s228 = int_to_ptr.vmem [resolvable:$true] %s227
          %233 = dma.hbm_to_vmem [thread:$0]  %s2, 4096, %s228, [#allocation6], 256, 256, 16
        $region16: #{tpu_custom_call.1} parent=11 // pred_fallthru
          _
        // Predicated region
        $region17: #{tpu_custom_call.1} parent=11 // pred_check
          %p234 = pneg %p117
        $region18: #{tpu_custom_call.1} parent=11 // pred_check_branch
          %236 = sbr.rel (%p234) target = $region20
        $region19: #{tpu_custom_call.1} parent=11 // pred_region
          %s238 = ssub.s32 4096, 4096
          %239 = vsyncadd [#allocation9], %s238
          %s240 = sshll.u32 [#allocation8], 4
          %s241 = int_to_ptr.vmem [resolvable:$true] %s240
          %246 = dma.hbm_to_vmem [thread:$0]  %s3, 4096, %s241, [#allocation9], 256, 256, 16
        $region20: #{tpu_custom_call.1} parent=11 // pred_fallthru
          _
        // Predicated region
        $region21: #{tpu_custom_call.1} parent=11 // pred_check
          %p247 = pneg %p138
        $region22: #{tpu_custom_call.1} parent=11 // pred_check_branch
          %249 = sbr.rel (%p247) target = $region24
        $region23: #{tpu_custom_call.1} parent=11 // pred_region
          _
        $region24: #{tpu_custom_call.1} parent=11 // pred_fallthru
          _
        // Predicated region
        $region25: #{tpu_custom_call.1} parent=11 // pred_check
          %p250 = pneg %p159
        $region26: #{tpu_custom_call.1} parent=11 // pred_check_branch
          %252 = sbr.rel (%p250) target = $region28
        $region27: #{tpu_custom_call.1} parent=11 // pred_region
          %s254 = ssub.s32 1024, 1024
          %255 = vsyncadd [#allocation9], %s254
          %s256 = sshll.u32 [#allocation10], 4
          %s257 = int_to_ptr.vmem [resolvable:$true] %s256
          %262 = dma.hbm_to_vmem [thread:$0]  %s5, 1024, %s257, [#allocation9], 64, 64, 4
        $region28: #{tpu_custom_call.1} parent=11 // pred_fallthru
          _
        // Predicated region
        $region29: #{tpu_custom_call.1} parent=11 // pred_check
          %p263 = pneg %p180
        $region30: #{tpu_custom_call.1} parent=11 // pred_check_branch
          %265 = sbr.rel (%p263) target = $region32
        $region31: #{tpu_custom_call.1} parent=11 // pred_region
          _
        $region32: #{tpu_custom_call.1} parent=11 // pred_fallthru
          _
      $region12: #{tpu_custom_call.1} parent=5 // pred_fallthru
        _
      %p266 = scmp.lt.s32.totalorder %s23, 2
      // Predicated region
      $region33: #{tpu_custom_call.1} parent=5 // pred_check
        %p267 = pneg %p266
      $region34: #{tpu_custom_call.1} parent=5 // pred_check_branch
        %269 = sbr.rel (%p267) target = $region36
      $region35: #{tpu_custom_call.1} parent=5 // pred_region
        // Predicated region
        $region37: #{tpu_custom_call.1} parent=35 // pred_check
          %p270 = pneg %p43
        $region38: #{tpu_custom_call.1} parent=35 // pred_check_branch
          %272 = sbr.rel (%p270) target = $region40
        $region39: #{tpu_custom_call.1} parent=35 // pred_region
          %s273 = sand.u32 %s33, 1
          %s274 = scalar_lea.sflag [#allocation3], %s273
          %s275 = sand.u32 %s33, 1
          %s276 = smul.addr %s275, 4
          %s277 = scalar_lea.vmem [#allocation2], %s276
          %s279 = ssub.s32 64, 64
          %280 = vsyncadd %s274, %s279
          %s281 = smul.addr %s23, 64
          %s282 = scalar_lea.hbm %s0, %s281
          %s284 = sshll.u32 %s277, 4
          %s285 = int_to_ptr.vmem [resolvable:$true] %s284
          %287 = dma.hbm_to_vmem [thread:$0]  %s282, 64, %s285, %s274
        $region40: #{tpu_custom_call.1} parent=35 // pred_fallthru
          _
        // Predicated region
        $region41: #{tpu_custom_call.1} parent=35 // pred_check
          %p288 = pneg %p69
        $region42: #{tpu_custom_call.1} parent=35 // pred_check_branch
          %290 = sbr.rel (%p288) target = $region44
        $region43: #{tpu_custom_call.1} parent=35 // pred_region
          %s291 = sand.u32 %s23, 1
          %s292 = scalar_lea.sflag [#allocation6], %s291
          %s293 = sand.u32 %s59, 1
          %s294 = smul.addr %s293, 8
          %s295 = scalar_lea.vmem [#allocation5], %s294
          %s297 = ssub.s32 128, 128
          %298 = vsyncadd %s292, %s297
          %s299 = smul.addr %s23, 128
          %s300 = scalar_lea.hbm %s1, %s299
          %s302 = sshll.u32 %s295, 4
          %s303 = int_to_ptr.vmem [resolvable:$true] %s302
          %305 = dma.hbm_to_vmem [thread:$0]  %s300, 128, %s303, %s292
        $region44: #{tpu_custom_call.1} parent=35 // pred_fallthru
          _
      $region36: #{tpu_custom_call.1} parent=5 // pred_fallthru
        _
      %p306 = scmp.le.s32.totalorder 1, %s23
      %p307 = scmp.lt.s32.totalorder %s23, 3
      %p308 = pnand %p306, %p307
      %p309 = pneg %p308
      // Predicated region
      $region45: #{tpu_custom_call.1} parent=5 // pred_check
        _
      $region46: #{tpu_custom_call.1} parent=5 // pred_check_branch
        %311 = sbr.rel (%p308) target = $region48
      $region47: #{tpu_custom_call.1} parent=5 // pred_region
        %s312 = ssub.s32 %s23, 1
        %s313 = sand.u32 %s36, 1
        %s314 = scalar_lea.sflag [#allocation3], %s313
        %s315 = sand.u32 %s36, 1
        %s316 = smul.addr %s315, 4
        %s317 = scalar_lea.vmem [#allocation2], %s316
        // Predicated region
        $region49: #{tpu_custom_call.1} parent=47 // pred_check
          %p318 = pneg %p49
        $region50: #{tpu_custom_call.1} parent=47 // pred_check_branch
          %320 = sbr.rel (%p318) target = $region52
        $region51: #{tpu_custom_call.1} parent=47 // pred_region
          %321 = dma.done %s314, 64
        $region52: #{tpu_custom_call.1} parent=47 // pred_fallthru
          _
        %s322 = sand.u32 %s28, 1
        %s323 = scalar_lea.sflag [#allocation6], %s322
        %s324 = sand.u32 %s62, 1
        %s325 = smul.addr %s324, 8
        %s326 = scalar_lea.vmem [#allocation5], %s325
        // Predicated region
        $region53: #{tpu_custom_call.1} parent=47 // pred_check
          %p327 = pneg %p75
        $region54: #{tpu_custom_call.1} parent=47 // pred_check_branch
          %329 = sbr.rel (%p327) target = $region56
        $region55: #{tpu_custom_call.1} parent=47 // pred_region
          %330 = dma.done %s323, 128
        $region56: #{tpu_custom_call.1} parent=47 // pred_fallthru
          _
        // Predicated region
        $region57: #{tpu_custom_call.1} parent=47 // pred_check
          %p331 = pneg %p96
        $region58: #{tpu_custom_call.1} parent=47 // pred_check_branch
          %333 = sbr.rel (%p331) target = $region60
        $region59: #{tpu_custom_call.1} parent=47 // pred_region
          %334 = dma.done [#allocation6], 4096
        $region60: #{tpu_custom_call.1} parent=47 // pred_fallthru
          _
        // Predicated region
        $region61: #{tpu_custom_call.1} parent=47 // pred_check
          %p335 = pneg %p117
        $region62: #{tpu_custom_call.1} parent=47 // pred_check_branch
          %337 = sbr.rel (%p335) target = $region64
        $region63: #{tpu_custom_call.1} parent=47 // pred_region
          %338 = dma.done [#allocation9], 4096
        $region64: #{tpu_custom_call.1} parent=47 // pred_fallthru
          _
        // Predicated region
        $region65: #{tpu_custom_call.1} parent=47 // pred_check
          %p339 = pneg %p159
        $region66: #{tpu_custom_call.1} parent=47 // pred_check_branch
          %341 = sbr.rel (%p339) target = $region68
        $region67: #{tpu_custom_call.1} parent=47 // pred_region
          %342 = dma.done [#allocation9], 1024
        $region68: #{tpu_custom_call.1} parent=47 // pred_fallthru
          _
        %s343 = sand.u32 %s36, 1
        %s344 = scalar_lea.sflag [#allocation3], %s343
        %s345 = sand.u32 %s36, 1
        %s346 = smul.addr %s345, 4
        %s347 = scalar_lea.vmem [#allocation2], %s346
        %p348 = pneg %p49
        %p349 = pneg %p46
        %s350 = sand.u32 %s28, 1
        %s351 = scalar_lea.sflag [#allocation6], %s350
        %s352 = sand.u32 %s62, 1
        %s353 = smul.addr %s352, 8
        %s354 = scalar_lea.vmem [#allocation5], %s353
        %p355 = pneg %p75
        %p356 = pneg %p72
        %p357 = pneg %p96
        %p358 = pneg %p93
        %p359 = pneg %p117
        %p360 = pneg %p114
        %p361 = pneg %p138
        %p362 = pneg %p135
        %p363 = pneg %p159
        %p364 = pneg %p156
        %p365 = pneg %p180
        %p366 = pneg %p177
        %p367 = pneg %p206
        %p368 = pneg %p203
        %s369 = sand.u32 %s193, 1
        %s370 = scalar_lea.sflag [#allocation4], %s369
        %s371 = sand.u32 %s193, 1
        %s372 = smul.addr %s371, 8
        %s373 = scalar_lea.vmem [#allocation11], %s372
        %v375 = vld [vmem:[%s326] sm:$0xff]
        %v376 = vld [vmem:[%s317] sm:$0xf]
        %v377 = vld [vmem:[#allocation7] sm:$0xff]
        %v378 = vld [vmem:[#allocation7 + $0x8] sm:$0xff]
        %v379 = vld [vmem:[#allocation7 + $0x10] sm:$0xff]
        %v380 = vld [vmem:[#allocation7 + $0x18] sm:$0xff]
        %v381 = vld [vmem:[#allocation7 + $0x20] sm:$0xff]
        %v382 = vld [vmem:[#allocation7 + $0x28] sm:$0xff]
        %v383 = vld [vmem:[#allocation7 + $0x30] sm:$0xff]
        %v384 = vld [vmem:[#allocation7 + $0x38] sm:$0xff]
        %v385 = vld [vmem:[#allocation7 + $0x40] sm:$0xff]
        %v386 = vld [vmem:[#allocation7 + $0x48] sm:$0xff]
        %v387 = vld [vmem:[#allocation7 + $0x50] sm:$0xff]
        %v388 = vld [vmem:[#allocation7 + $0x58] sm:$0xff]
        %v389 = vld [vmem:[#allocation7 + $0x60] sm:$0xff]
        %v390 = vld [vmem:[#allocation7 + $0x68] sm:$0xff]
        %v391 = vld [vmem:[#allocation7 + $0x70] sm:$0xff]
        %v392 = vld [vmem:[#allocation7 + $0x78] sm:$0xff]
        %v393 = vld [vmem:[#allocation7 + $0x80] sm:$0xff]
        %v394 = vld [vmem:[#allocation7 + $0x88] sm:$0xff]
        %v395 = vld [vmem:[#allocation7 + $0x90] sm:$0xff]
        %v396 = vld [vmem:[#allocation7 + $0x98] sm:$0xff]
        %v397 = vld [vmem:[#allocation7 + $0xa0] sm:$0xff]
        %v398 = vld [vmem:[#allocation7 + $0xa8] sm:$0xff]
        %v399 = vld [vmem:[#allocation7 + $0xb0] sm:$0xff]
        %v400 = vld [vmem:[#allocation7 + $0xb8] sm:$0xff]
        %v401 = vld [vmem:[#allocation7 + $0xc0] sm:$0xff]
        %v402 = vld [vmem:[#allocation7 + $0xc8] sm:$0xff]
        %v403 = vld [vmem:[#allocation7 + $0xd0] sm:$0xff]
        %v404 = vld [vmem:[#allocation7 + $0xd8] sm:$0xff]
        %v405 = vld [vmem:[#allocation7 + $0xe0] sm:$0xff]
        %v406 = vld [vmem:[#allocation7 + $0xe8] sm:$0xff]
        %v407 = vld [vmem:[#allocation7 + $0xf0] sm:$0xff]
        %v408 = vld [vmem:[#allocation7 + $0xf8] sm:$0xff]
        %v409 = vpack.c.bf16 %v375, %v375
        %v410 = vld [vmem:[#allocation8] sm:$0xff]
        %v411 = vld [vmem:[#allocation8 + $0x8] sm:$0xff]
        %v412 = vld [vmem:[#allocation8 + $0x10] sm:$0xff]
        %v413 = vld [vmem:[#allocation8 + $0x18] sm:$0xff]
        %v414 = vld [vmem:[#allocation8 + $0x20] sm:$0xff]
        %v415 = vld [vmem:[#allocation8 + $0x28] sm:$0xff]
        %v416 = vld [vmem:[#allocation8 + $0x30] sm:$0xff]
        %v417 = vld [vmem:[#allocation8 + $0x38] sm:$0xff]
        %v418 = vld [vmem:[#allocation8 + $0x40] sm:$0xff]
        %v419 = vld [vmem:[#allocation8 + $0x48] sm:$0xff]
        %v420 = vld [vmem:[#allocation8 + $0x50] sm:$0xff]
        %v421 = vld [vmem:[#allocation8 + $0x58] sm:$0xff]
        %v422 = vld [vmem:[#allocation8 + $0x60] sm:$0xff]
        %v423 = vld [vmem:[#allocation8 + $0x68] sm:$0xff]
        %v424 = vld [vmem:[#allocation8 + $0x70] sm:$0xff]
        %v425 = vld [vmem:[#allocation8 + $0x78] sm:$0xff]
        %v426 = vld [vmem:[#allocation8 + $0x80] sm:$0xff]
        %v427 = vld [vmem:[#allocation8 + $0x88] sm:$0xff]
        %v428 = vld [vmem:[#allocation8 + $0x90] sm:$0xff]
        %v429 = vld [vmem:[#allocation8 + $0x98] sm:$0xff]
        %v430 = vld [vmem:[#allocation8 + $0xa0] sm:$0xff]
        %v431 = vld [vmem:[#allocation8 + $0xa8] sm:$0xff]
        %v432 = vld [vmem:[#allocation8 + $0xb0] sm:$0xff]
        %v433 = vld [vmem:[#allocation8 + $0xb8] sm:$0xff]
        %v434 = vld [vmem:[#allocation8 + $0xc0] sm:$0xff]
        %v435 = vld [vmem:[#allocation8 + $0xc8] sm:$0xff]
        %v436 = vld [vmem:[#allocation8 + $0xd0] sm:$0xff]
        %v437 = vld [vmem:[#allocation8 + $0xd8] sm:$0xff]
        %v438 = vld [vmem:[#allocation8 + $0xe0] sm:$0xff]
        %v439 = vld [vmem:[#allocation8 + $0xe8] sm:$0xff]
        %v440 = vld [vmem:[#allocation8 + $0xf0] sm:$0xff]
        %v441 = vld [vmem:[#allocation8 + $0xf8] sm:$0xff]
        %v474 = vunpack.c.l.b16 %v410
        %v475 = vunpack.c.h.b16 %v410
        %v476 = vunpack.c.l.b16 %v411
        %v477 = vunpack.c.h.b16 %v411
        %v478 = vunpack.c.l.b16 %v412
        %v479 = vunpack.c.h.b16 %v412
        %v480 = vunpack.c.l.b16 %v413
        %v481 = vunpack.c.h.b16 %v413
        %v482 = vunpack.c.l.b16 %v414
        %v483 = vunpack.c.h.b16 %v414
        %v484 = vunpack.c.l.b16 %v415
        %v485 = vunpack.c.h.b16 %v415
        %v486 = vunpack.c.l.b16 %v416
        %v487 = vunpack.c.h.b16 %v416
        %v488 = vunpack.c.l.b16 %v417
        %v489 = vunpack.c.h.b16 %v417
        %v490 = vunpack.c.l.b16 %v418
        %v491 = vunpack.c.h.b16 %v418
        %v492 = vunpack.c.l.b16 %v419
        %v493 = vunpack.c.h.b16 %v419
        %v494 = vunpack.c.l.b16 %v420
        %v495 = vunpack.c.h.b16 %v420
        %v496 = vunpack.c.l.b16 %v421
        %v497 = vunpack.c.h.b16 %v421
        %v498 = vunpack.c.l.b16 %v422
        %v499 = vunpack.c.h.b16 %v422
        %v500 = vunpack.c.l.b16 %v423
        %v501 = vunpack.c.h.b16 %v423
        %v502 = vunpack.c.l.b16 %v424
        %v503 = vunpack.c.h.b16 %v424
        %v504 = vunpack.c.l.b16 %v425
        %v505 = vunpack.c.h.b16 %v425
        %v506 = vunpack.c.l.b16 %v426
        %v507 = vunpack.c.h.b16 %v426
        %v508 = vunpack.c.l.b16 %v427
        %v509 = vunpack.c.h.b16 %v427
        %v510 = vunpack.c.l.b16 %v428
        %v511 = vunpack.c.h.b16 %v428
        %v512 = vunpack.c.l.b16 %v429
        %v513 = vunpack.c.h.b16 %v429
        %v514 = vunpack.c.l.b16 %v430
        %v515 = vunpack.c.h.b16 %v430
        %v516 = vunpack.c.l.b16 %v431
        %v517 = vunpack.c.h.b16 %v431
        %v518 = vunpack.c.l.b16 %v432
        %v519 = vunpack.c.h.b16 %v432
        %v520 = vunpack.c.l.b16 %v433
        %v521 = vunpack.c.h.b16 %v433
        %v522 = vunpack.c.l.b16 %v434
        %v523 = vunpack.c.h.b16 %v434
        %v524 = vunpack.c.l.b16 %v435
        %v525 = vunpack.c.h.b16 %v435
        %v526 = vunpack.c.l.b16 %v436
        %v527 = vunpack.c.h.b16 %v436
        %v528 = vunpack.c.l.b16 %v437
        %v529 = vunpack.c.h.b16 %v437
        %v530 = vunpack.c.l.b16 %v438
        %v531 = vunpack.c.h.b16 %v438
        %v532 = vunpack.c.l.b16 %v439
        %v533 = vunpack.c.h.b16 %v439
        %v534 = vunpack.c.l.b16 %v440
        %v535 = vunpack.c.h.b16 %v440
        %v536 = vunpack.c.l.b16 %v441
        %v537 = vunpack.c.h.b16 %v441
        %v538 = vpack.c.b16 %v478, %v474
        %v539 = vpack.c.b16 %v479, %v475
        %v540 = vpack.c.b16 %v480, %v476
        %v541 = vpack.c.b16 %v481, %v477
        %v542 = vpack.c.b16 %v486, %v482
        %v543 = vpack.c.b16 %v487, %v483
        %v544 = vpack.c.b16 %v488, %v484
        %v545 = vpack.c.b16 %v489, %v485
        %v546 = vpack.c.b16 %v494, %v490
        %v547 = vpack.c.b16 %v495, %v491
        %v548 = vpack.c.b16 %v496, %v492
        %v549 = vpack.c.b16 %v497, %v493
        %v550 = vpack.c.b16 %v502, %v498
        %v551 = vpack.c.b16 %v503, %v499
        %v552 = vpack.c.b16 %v504, %v500
        %v553 = vpack.c.b16 %v505, %v501
        %v554 = vpack.c.b16 %v510, %v506
        %v555 = vpack.c.b16 %v511, %v507
        %v556 = vpack.c.b16 %v512, %v508
        %v557 = vpack.c.b16 %v513, %v509
        %v558 = vpack.c.b16 %v518, %v514
        %v559 = vpack.c.b16 %v519, %v515
        %v560 = vpack.c.b16 %v520, %v516
        %v561 = vpack.c.b16 %v521, %v517
        %v562 = vpack.c.b16 %v526, %v522
        %v563 = vpack.c.b16 %v527, %v523
        %v564 = vpack.c.b16 %v528, %v524
        %v565 = vpack.c.b16 %v529, %v525
        %v566 = vpack.c.b16 %v534, %v530
        %v567 = vpack.c.b16 %v535, %v531
        %v568 = vpack.c.b16 %v536, %v532
        %v569 = vpack.c.b16 %v537, %v533
        %602 = vmatprep.subr.bf16.mxu0 %v539
        %603 = vmatpush1.bf16.msra.mxu0 %v538
        %604 = vmatprep.subr.bf16.mxu0 %v543
        %605 = vmatpush1.bf16.msra.mxu0 %v542
        %606 = vmatprep.subr.bf16.mxu0 %v547
        %607 = vmatpush1.bf16.msra.mxu0 %v546
        %608 = vmatprep.subr.bf16.mxu0 %v551
        %609 = vmatpush1.bf16.msra.mxu0 %v550
        %610 = vmatprep.subr.bf16.mxu0 %v555
        %611 = vmatpush1.bf16.msra.mxu0 %v554
        %612 = vmatprep.subr.bf16.mxu0 %v559
        %613 = vmatpush1.bf16.msra.mxu0 %v558
        %614 = vmatprep.subr.bf16.mxu0 %v563
        %615 = vmatpush1.bf16.msra.mxu0 %v562
        %616 = vmatprep.subr.bf16.mxu0 %v567
        %617 = vmatpush1.bf16.msra.mxu0 %v566
        %618 = vmatprep.subr.bf16.mxu0 0
        %619 = vmatpush1.bf16.msra.mxu0 0
        %620 = vmatprep.subr.bf16.mxu0 0
        %621 = vmatpush1.bf16.msra.mxu0 0
        %622 = vmatprep.subr.bf16.mxu0 0
        %623 = vmatpush1.bf16.msra.mxu0 0
        %624 = vmatprep.subr.bf16.mxu0 0
        %625 = vmatpush1.bf16.msra.mxu0 0
        %626 = vmatprep.subr.bf16.mxu0 0
        %627 = vmatpush1.bf16.msra.mxu0 0
        %628 = vmatprep.subr.bf16.mxu0 0
        %629 = vmatpush1.bf16.msra.mxu0 0
        %630 = vmatprep.subr.bf16.mxu0 0
        %631 = vmatpush1.bf16.msra.mxu0 0
        %632 = vmatprep.subr.bf16.mxu0 0
        %633 = vmatpush1.bf16.msra.mxu0 0
        %634 = vmatprep.mubr.bf16.mxu0 0
        %635 = vmatmul.mubr.bf16.gmra.mrb[0].mxu0 %v409
        %v636 = vpop.f32.mrb[0].mxu0
        %v637 = vadd.f32 0.0, %v636
        %v638 = vpop.f32.mrb[0].mxu0
        %v639 = vadd.f32 0.0, %v638
        %v640 = vpop.f32.mrb[0].mxu0
        %v641 = vpop.f32.mrb[0].mxu0
        %642 = vdwg.mxu0
        %643 = vmatprep.subr.bf16.mxu0 %v541
        %644 = vmatpush1.bf16.msra.mxu0 %v540
        %645 = vmatprep.subr.bf16.mxu0 %v545
        %646 = vmatpush1.bf16.msra.mxu0 %v544
        %647 = vmatprep.subr.bf16.mxu0 %v549
        %648 = vmatpush1.bf16.msra.mxu0 %v548
        %649 = vmatprep.subr.bf16.mxu0 %v553
        %650 = vmatpush1.bf16.msra.mxu0 %v552
        %651 = vmatprep.subr.bf16.mxu0 %v557
        %652 = vmatpush1.bf16.msra.mxu0 %v556
        %653 = vmatprep.subr.bf16.mxu0 %v561
        %654 = vmatpush1.bf16.msra.mxu0 %v560
        %655 = vmatprep.subr.bf16.mxu0 %v565
        %656 = vmatpush1.bf16.msra.mxu0 %v564
        %657 = vmatprep.subr.bf16.mxu0 %v569
        %658 = vmatpush1.bf16.msra.mxu0 %v568
        %659 = vmatprep.subr.bf16.mxu0 0
        %660 = vmatpush1.bf16.msra.mxu0 0
        %661 = vmatprep.subr.bf16.mxu0 0
        %662 = vmatpush1.bf16.msra.mxu0 0
        %663 = vmatprep.subr.bf16.mxu0 0
        %664 = vmatpush1.bf16.msra.mxu0 0
        %665 = vmatprep.subr.bf16.mxu0 0
        %666 = vmatpush1.bf16.msra.mxu0 0
        %667 = vmatprep.subr.bf16.mxu0 0
        %668 = vmatpush1.bf16.msra.mxu0 0
        %669 = vmatprep.subr.bf16.mxu0 0
        %670 = vmatpush1.bf16.msra.mxu0 0
        %671 = vmatprep.subr.bf16.mxu0 0
        %672 = vmatpush1.bf16.msra.mxu0 0
        %673 = vmatprep.subr.bf16.mxu0 0
        %674 = vmatpush1.bf16.msra.mxu0 0
        %675 = vmatprep.mubr.bf16.mxu0 0
        %676 = vmatmul.mubr.bf16.gmra.mrb[0].mxu0 %v409
        %v677 = vpop.f32.mrb[0].mxu0
        %v678 = vadd.f32 0.0, %v677
        %v679 = vpop.f32.mrb[0].mxu0
        %v680 = vadd.f32 0.0, %v679
        %v681 = vpop.f32.mrb[0].mxu0
        %v682 = vpop.f32.mrb[0].mxu0
        %683 = vdwg.mxu0
        %v716 = vunpack.c.l.b16 %v377
        %v717 = vunpack.c.h.b16 %v377
        %v718 = vunpack.c.l.b16 %v378
        %v719 = vunpack.c.h.b16 %v378
        %v720 = vunpack.c.l.b16 %v379
        %v721 = vunpack.c.h.b16 %v379
        %v722 = vunpack.c.l.b16 %v380
        %v723 = vunpack.c.h.b16 %v380
        %v724 = vunpack.c.l.b16 %v381
        %v725 = vunpack.c.h.b16 %v381
        %v726 = vunpack.c.l.b16 %v382
        %v727 = vunpack.c.h.b16 %v382
        %v728 = vunpack.c.l.b16 %v383
        %v729 = vunpack.c.h.b16 %v383
        %v730 = vunpack.c.l.b16 %v384
        %v731 = vunpack.c.h.b16 %v384
        %v732 = vunpack.c.l.b16 %v385
        %v733 = vunpack.c.h.b16 %v385
        %v734 = vunpack.c.l.b16 %v386
        %v735 = vunpack.c.h.b16 %v386
        %v736 = vunpack.c.l.b16 %v387
        %v737 = vunpack.c.h.b16 %v387
        %v738 = vunpack.c.l.b16 %v388
        %v739 = vunpack.c.h.b16 %v388
        %v740 = vunpack.c.l.b16 %v389
        %v741 = vunpack.c.h.b16 %v389
        %v742 = vunpack.c.l.b16 %v390
        %v743 = vunpack.c.h.b16 %v390
        %v744 = vunpack.c.l.b16 %v391
        %v745 = vunpack.c.h.b16 %v391
        %v746 = vunpack.c.l.b16 %v392
        %v747 = vunpack.c.h.b16 %v392
        %v748 = vunpack.c.l.b16 %v393
        %v749 = vunpack.c.h.b16 %v393
        %v750 = vunpack.c.l.b16 %v394
        %v751 = vunpack.c.h.b16 %v394
        %v752 = vunpack.c.l.b16 %v395
        %v753 = vunpack.c.h.b16 %v395
        %v754 = vunpack.c.l.b16 %v396
        %v755 = vunpack.c.h.b16 %v396
        %v756 = vunpack.c.l.b16 %v397
        %v757 = vunpack.c.h.b16 %v397
        %v758 = vunpack.c.l.b16 %v398
        %v759 = vunpack.c.h.b16 %v398
        %v760 = vunpack.c.l.b16 %v399
        %v761 = vunpack.c.h.b16 %v399
        %v762 = vunpack.c.l.b16 %v400
        %v763 = vunpack.c.h.b16 %v400
        %v764 = vunpack.c.l.b16 %v401
        %v765 = vunpack.c.h.b16 %v401
        %v766 = vunpack.c.l.b16 %v402
        %v767 = vunpack.c.h.b16 %v402
        %v768 = vunpack.c.l.b16 %v403
        %v769 = vunpack.c.h.b16 %v403
        %v770 = vunpack.c.l.b16 %v404
        %v771 = vunpack.c.h.b16 %v404
        %v772 = vunpack.c.l.b16 %v405
        %v773 = vunpack.c.h.b16 %v405
        %v774 = vunpack.c.l.b16 %v406
        %v775 = vunpack.c.h.b16 %v406
        %v776 = vunpack.c.l.b16 %v407
        %v777 = vunpack.c.h.b16 %v407
        %v778 = vunpack.c.l.b16 %v408
        %v779 = vunpack.c.h.b16 %v408
        %v780 = vpack.c.b16 %v720, %v716
        %v781 = vpack.c.b16 %v721, %v717
        %v782 = vpack.c.b16 %v722, %v718
        %v783 = vpack.c.b16 %v723, %v719
        %v784 = vpack.c.b16 %v728, %v724
        %v785 = vpack.c.b16 %v729, %v725
        %v786 = vpack.c.b16 %v730, %v726
        %v787 = vpack.c.b16 %v731, %v727
        %v788 = vpack.c.b16 %v736, %v732
        %v789 = vpack.c.b16 %v737, %v733
        %v790 = vpack.c.b16 %v738, %v734
        %v791 = vpack.c.b16 %v739, %v735
        %v792 = vpack.c.b16 %v744, %v740
        %v793 = vpack.c.b16 %v745, %v741
        %v794 = vpack.c.b16 %v746, %v742
        %v795 = vpack.c.b16 %v747, %v743
        %v796 = vpack.c.b16 %v752, %v748
        %v797 = vpack.c.b16 %v753, %v749
        %v798 = vpack.c.b16 %v754, %v750
        %v799 = vpack.c.b16 %v755, %v751
        %v800 = vpack.c.b16 %v760, %v756
        %v801 = vpack.c.b16 %v761, %v757
        %v802 = vpack.c.b16 %v762, %v758
        %v803 = vpack.c.b16 %v763, %v759
        %v804 = vpack.c.b16 %v768, %v764
        %v805 = vpack.c.b16 %v769, %v765
        %v806 = vpack.c.b16 %v770, %v766
        %v807 = vpack.c.b16 %v771, %v767
        %v808 = vpack.c.b16 %v776, %v772
        %v809 = vpack.c.b16 %v777, %v773
        %v810 = vpack.c.b16 %v778, %v774
        %v811 = vpack.c.b16 %v779, %v775
        %844 = vmatprep.subr.bf16.mxu0 %v781
        %845 = vmatpush1.bf16.msra.mxu0 %v780
        %846 = vmatprep.subr.bf16.mxu0 %v785
        %847 = vmatpush1.bf16.msra.mxu0 %v784
        %848 = vmatprep.subr.bf16.mxu0 %v789
        %849 = vmatpush1.bf16.msra.mxu0 %v788
        %850 = vmatprep.subr.bf16.mxu0 %v793
        %851 = vmatpush1.bf16.msra.mxu0 %v792
        %852 = vmatprep.subr.bf16.mxu0 %v797
        %853 = vmatpush1.bf16.msra.mxu0 %v796
        %854 = vmatprep.subr.bf16.mxu0 %v801
        %855 = vmatpush1.bf16.msra.mxu0 %v800
        %856 = vmatprep.subr.bf16.mxu0 %v805
        %857 = vmatpush1.bf16.msra.mxu0 %v804
        %858 = vmatprep.subr.bf16.mxu0 %v809
        %859 = vmatpush1.bf16.msra.mxu0 %v808
        %860 = vmatprep.subr.bf16.mxu0 0
        %861 = vmatpush1.bf16.msra.mxu0 0
        %862 = vmatprep.subr.bf16.mxu0 0
        %863 = vmatpush1.bf16.msra.mxu0 0
        %864 = vmatprep.subr.bf16.mxu0 0
        %865 = vmatpush1.bf16.msra.mxu0 0
        %866 = vmatprep.subr.bf16.mxu0 0
        %867 = vmatpush1.bf16.msra.mxu0 0
        %868 = vmatprep.subr.bf16.mxu0 0
        %869 = vmatpush1.bf16.msra.mxu0 0
        %870 = vmatprep.subr.bf16.mxu0 0
        %871 = vmatpush1.bf16.msra.mxu0 0
        %872 = vmatprep.subr.bf16.mxu0 0
        %873 = vmatpush1.bf16.msra.mxu0 0
        %874 = vmatprep.subr.bf16.mxu0 0
        %875 = vmatpush1.bf16.msra.mxu0 0
        %876 = vmatprep.mubr.bf16.mxu0 0
        %877 = vmatmul.mubr.bf16.gmra.mrb[0].mxu0 %v376
        %v878 = vpop.f32.mrb[0].mxu0
        %v879 = vadd.f32 %v637, %v878
        %v880 = vpop.f32.mrb[0].mxu0
        %v881 = vadd.f32 %v639, %v880
        %v882 = vpop.f32.mrb[0].mxu0
        %v883 = vpop.f32.mrb[0].mxu0
        %884 = vdwg.mxu0
        %885 = vmatprep.subr.bf16.mxu0 %v783
        %886 = vmatpush1.bf16.msra.mxu0 %v782
        %887 = vmatprep.subr.bf16.mxu0 %v787
        %888 = vmatpush1.bf16.msra.mxu0 %v786
        %889 = vmatprep.subr.bf16.mxu0 %v791
        %890 = vmatpush1.bf16.msra.mxu0 %v790
        %891 = vmatprep.subr.bf16.mxu0 %v795
        %892 = vmatpush1.bf16.msra.mxu0 %v794
        %893 = vmatprep.subr.bf16.mxu0 %v799
        %894 = vmatpush1.bf16.msra.mxu0 %v798
        %895 = vmatprep.subr.bf16.mxu0 %v803
        %896 = vmatpush1.bf16.msra.mxu0 %v802
        %897 = vmatprep.subr.bf16.mxu0 %v807
        %898 = vmatpush1.bf16.msra.mxu0 %v806
        %899 = vmatprep.subr.bf16.mxu0 %v811
        %900 = vmatpush1.bf16.msra.mxu0 %v810
        %901 = vmatprep.subr.bf16.mxu0 0
        %902 = vmatpush1.bf16.msra.mxu0 0
        %903 = vmatprep.subr.bf16.mxu0 0
        %904 = vmatpush1.bf16.msra.mxu0 0
        %905 = vmatprep.subr.bf16.mxu0 0
        %906 = vmatpush1.bf16.msra.mxu0 0
        %907 = vmatprep.subr.bf16.mxu0 0
        %908 = vmatpush1.bf16.msra.mxu0 0
        %909 = vmatprep.subr.bf16.mxu0 0
        %910 = vmatpush1.bf16.msra.mxu0 0
        %911 = vmatprep.subr.bf16.mxu0 0
        %912 = vmatpush1.bf16.msra.mxu0 0
        %913 = vmatprep.subr.bf16.mxu0 0
        %914 = vmatpush1.bf16.msra.mxu0 0
        %915 = vmatprep.subr.bf16.mxu0 0
        %916 = vmatpush1.bf16.msra.mxu0 0
        %917 = vmatprep.mubr.bf16.mxu0 0
        %918 = vmatmul.mubr.bf16.gmra.mrb[0].mxu0 %v376
        %v919 = vpop.f32.mrb[0].mxu0
        %v920 = vadd.f32 %v678, %v919
        %v921 = vpop.f32.mrb[0].mxu0
        %v922 = vadd.f32 %v680, %v921
        %v923 = vpop.f32.mrb[0].mxu0
        %v924 = vpop.f32.mrb[0].mxu0
        %925 = vdwg.mxu0
        %v926 = vld [vmem:[%s4] sm:$0xf]
        %v928 = vlaneseq
        %v929 = vshrl.u32 %v928, 7
        %v930 = vsub.s32 0, %v929
        %v931 = vrot.slane %v926, %v930
        %v932 = vlaneseq
        %v933 = vshrl.u32 %v932, 7
        %v934 = vsub.s32 1, %v933
        %v935 = vrot.slane %v926, %v934
        %v936 = vlaneseq
        %v937 = vshrl.u32 %v936, 7
        %v938 = vsub.s32 2, %v937
        %v939 = vrot.slane %v926, %v938
        %v940 = vlaneseq
        %v941 = vshrl.u32 %v940, 7
        %v942 = vsub.s32 3, %v941
        %v943 = vrot.slane %v926, %v942
        %v948 = vadd.f32 %v879, %v931
        %v949 = vadd.f32 %v881, %v935
        %v950 = vadd.f32 %v920, %v939
        %v951 = vadd.f32 %v922, %v943
        %v952 = vsub.f32 %v948, %v949
        %v953 = vxor.u32 %v952, 2147483648
        %v954 = vmul.f32 %v953, 1.442695
        %v955 = vpow.pop %v954
        %v956 = vadd.f32 %v955, 1.0
        %v957 = vrcp.pop %v956
        %v958 = vmul.f32 1.0, %v957
        %v959 = vtanh.pop %v950
        %v960 = vsub.f32 %v959, %v375
        %v961 = vmul.f32 %v958, %v960
        %v962 = vadd.f32 %v375, %v961
        %v963 = vxor.u32 %v951, 2147483648
        %v964 = vmul.f32 %v963, 1.442695
        %v965 = vpow.pop %v964
        %v966 = vadd.f32 %v965, 1.0
        %v967 = vrcp.pop %v966
        %v968 = vmul.f32 1.0, %v967
        %v969 = vtanh.pop %v962
        %v970 = vmul.f32 %v968, %v969
        %v971 = vpack.c.bf16 %v970, %v970
        %v972 = vld [vmem:[#allocation10] sm:$0xf]
        %v973 = vld [vmem:[#allocation10 + $0x4] sm:$0xf]
        %v974 = vld [vmem:[#allocation10 + $0x8] sm:$0xf]
        %v975 = vld [vmem:[#allocation10 + $0xc] sm:$0xf]
        %v976 = vld [vmem:[#allocation10 + $0x10] sm:$0xf]
        %v977 = vld [vmem:[#allocation10 + $0x14] sm:$0xf]
        %v978 = vld [vmem:[#allocation10 + $0x18] sm:$0xf]
        %v979 = vld [vmem:[#allocation10 + $0x1c] sm:$0xf]
        %v980 = vld [vmem:[#allocation10 + $0x20] sm:$0xf]
        %v981 = vld [vmem:[#allocation10 + $0x24] sm:$0xf]
        %v982 = vld [vmem:[#allocation10 + $0x28] sm:$0xf]
        %v983 = vld [vmem:[#allocation10 + $0x2c] sm:$0xf]
        %v984 = vld [vmem:[#allocation10 + $0x30] sm:$0xf]
        %v985 = vld [vmem:[#allocation10 + $0x34] sm:$0xf]
        %v986 = vld [vmem:[#allocation10 + $0x38] sm:$0xf]
        %v987 = vld [vmem:[#allocation10 + $0x3c] sm:$0xf]
        %v988 = vld [vmem:[%s6] sm:$0x1]
        %v990 = vlaneseq
        %v991 = vshrl.u32 %v990, 7
        %v992 = vsub.s32 0, %v991
        %v993 = vrot.slane %v988, %v992
        %v1011 = vunpack.c.l.b16 %v972
        %v1012 = vunpack.c.l.b16 %v973
        %v1013 = vunpack.c.l.b16 %v974
        %v1014 = vunpack.c.l.b16 %v975
        %v1015 = vunpack.c.l.b16 %v976
        %v1016 = vunpack.c.l.b16 %v977
        %v1017 = vunpack.c.l.b16 %v978
        %v1018 = vunpack.c.l.b16 %v979
        %v1019 = vunpack.c.l.b16 %v980
        %v1020 = vunpack.c.l.b16 %v981
        %v1021 = vunpack.c.l.b16 %v982
        %v1022 = vunpack.c.l.b16 %v983
        %v1023 = vunpack.c.l.b16 %v984
        %v1024 = vunpack.c.l.b16 %v985
        %v1025 = vunpack.c.l.b16 %v986
        %v1026 = vunpack.c.l.b16 %v987
        %v1027 = vpack.c.b16 %v1012, %v1011
        %v1028 = vpack.c.b16 %v1014, %v1013
        %v1029 = vpack.c.b16 %v1016, %v1015
        %v1030 = vpack.c.b16 %v1018, %v1017
        %v1031 = vpack.c.b16 %v1020, %v1019
        %v1032 = vpack.c.b16 %v1022, %v1021
        %v1033 = vpack.c.b16 %v1024, %v1023
        %v1034 = vpack.c.b16 %v1026, %v1025
        %1043 = vmatprep.subr.bf16.mxu0 0
        %1044 = vmatpush1.bf16.msra.mxu0 %v1027
        %1045 = vmatprep.subr.bf16.mxu0 0
        %1046 = vmatpush1.bf16.msra.mxu0 %v1028
        %1047 = vmatprep.subr.bf16.mxu0 0
        %1048 = vmatpush1.bf16.msra.mxu0 %v1029
        %1049 = vmatprep.subr.bf16.mxu0 0
        %1050 = vmatpush1.bf16.msra.mxu0 %v1030
        %1051 = vmatprep.subr.bf16.mxu0 0
        %1052 = vmatpush1.bf16.msra.mxu0 %v1031
        %1053 = vmatprep.subr.bf16.mxu0 0
        %1054 = vmatpush1.bf16.msra.mxu0 %v1032
        %1055 = vmatprep.subr.bf16.mxu0 0
        %1056 = vmatpush1.bf16.msra.mxu0 %v1033
        %1057 = vmatprep.subr.bf16.mxu0 0
        %1058 = vmatpush1.bf16.msra.mxu0 %v1034
        %1059 = vmatprep.subr.bf16.mxu0 0
        %1060 = vmatpush1.bf16.msra.mxu0 0
        %1061 = vmatprep.subr.bf16.mxu0 0
        %1062 = vmatpush1.bf16.msra.mxu0 0
        %1063 = vmatprep.subr.bf16.mxu0 0
        %1064 = vmatpush1.bf16.msra.mxu0 0
        %1065 = vmatprep.subr.bf16.mxu0 0
        %1066 = vmatpush1.bf16.msra.mxu0 0
        %1067 = vmatprep.subr.bf16.mxu0 0
        %1068 = vmatpush1.bf16.msra.mxu0 0
        %1069 = vmatprep.subr.bf16.mxu0 0
        %1070 = vmatpush1.bf16.msra.mxu0 0
        %1071 = vmatprep.subr.bf16.mxu0 0
        %1072 = vmatpush1.bf16.msra.mxu0 0
        %1073 = vmatprep.subr.bf16.mxu0 0
        %1074 = vmatpush1.bf16.msra.mxu0 0
        %1075 = vmatprep.mubr.bf16.mxu0 0
        %1076 = vmatmul.mubr.bf16.gmra.mrb[0].mxu0 %v971
        %v1077 = vpop.f32.mrb[0].mxu0
        %v1078 = vadd.f32 %v993, %v1077
        %v1079 = vpop.f32.mrb[0].mxu0
        %v1080 = vpop.f32.mrb[0].mxu0
        %v1081 = vpop.f32.mrb[0].mxu0
        %1082 = vdwg.mxu0
        %1083 = vst [vmem:[%s373] sm:$0xff] %v1078
        %s1084 = sand.u32 %s193, 1
        %s1085 = scalar_lea.sflag [#allocation4], %s1084
        %s1086 = sand.u32 %s193, 1
        %s1087 = smul.addr %s1086, 8
        %s1088 = scalar_lea.vmem [#allocation11], %s1087
        // Predicated region
        $region69: #{tpu_custom_call.1} parent=47 // pred_check
          %p1089 = pneg %p203
        $region70: #{tpu_custom_call.1} parent=47 // pred_check_branch
          %1091 = sbr.rel (%p1089) target = $region72
        $region71: #{tpu_custom_call.1} parent=47 // pred_region
          %s1093 = ssub.s32 128, 128
          %1094 = vsyncadd %s1085, %s1093
          %s1095 = smul.addr %s28, 128
          %s1096 = scalar_lea.hbm %s7, %s1095
          %s1098 = sshll.u32 %s1088, 4
          %s1099 = int_to_ptr.vmem [resolvable:$true] %s1098
          %1101 = dma.vmem_to_hbm [thread:$0]  %s1099, 128, %s1096, %s1085
        $region72: #{tpu_custom_call.1} parent=47 // pred_fallthru
          _
      $region48: #{tpu_custom_call.1} parent=5 // pred_fallthru
        _
      %p1102 = scmp.le.s32.totalorder 2, %s23
      // Predicated region
      $region73: #{tpu_custom_call.1} parent=5 // pred_check
        %p1103 = pneg %p1102
      $region74: #{tpu_custom_call.1} parent=5 // pred_check_branch
        %1105 = sbr.rel (%p1103) target = $region76
      $region75: #{tpu_custom_call.1} parent=5 // pred_region
        %s1106 = ssub.s32 %s23, 2
        // Predicated region
        $region77: #{tpu_custom_call.1} parent=75 // pred_check
          %p1107 = pneg %p209
        $region78: #{tpu_custom_call.1} parent=75 // pred_check_branch
          %1109 = sbr.rel (%p1107) target = $region80
        $region79: #{tpu_custom_call.1} parent=75 // pred_region
          %s1110 = sand.u32 %s194, 1
          %s1111 = scalar_lea.sflag [#allocation4], %s1110
          %s1112 = sand.u32 %s194, 1
          %s1113 = smul.addr %s1112, 8
          %s1114 = scalar_lea.vmem [#allocation11], %s1113
          %1115 = dma.done %s1111, 128
        $region80: #{tpu_custom_call.1} parent=75 // pred_fallthru
          _
      $region76: #{tpu_custom_call.1} parent=5 // pred_fallthru
        _
    $region6: #{tpu_custom_call.1} parent=1 // loop_footer
      %s27 = sadd.s32 1, %s23
    $region7: #{tpu_custom_call.1} parent=1 // loop_footer_branch
      %22 = sbr.rel target = $region3
    $region8: #{tpu_custom_call.1} parent=1 // loop_exit
      _
    %1116 = vsyncpa [#allocation3], 1
    %s1117 = scalar_lea.sflag [#allocation3], 1
    %1118 = vsyncpa %s1117, 1
    %1119 = vsyncpa [#allocation6], 1
    %s1120 = scalar_lea.sflag [#allocation6], 1
    %1121 = vsyncpa %s1120, 1
    %1122 = vsyncpa [#allocation9], 1
    %1123 = vsyncpa [#allocation4], 1
    %s1124 = scalar_lea.sflag [#allocation4], 1
    %1125 = vsyncpa %s1124, 1

</llo_original>
